<compile_context>
chip_gen: v5e
topology: v5e:2x2
jax: 0.10.0
libtpu: 0.0.40
codegen_flags: <defaults>
</compile_context>

<pallas_src>
import jax
import jax.numpy as jnp
from jax.experimental import pallas as pl
from jax.experimental.pallas import tpu as pltpu


_LANES = 128  # lane-dense output slab width


def _round_up(x, m):
    return (x + m - 1) // m * m


# ------------------------------- kernel -------------------------------------
def ppo_actor_kernel(
    obs_ref,               # [TB, obs_dim] bf16
    wf_ref, bf_ref,        # feature net   (bf16 W, f32 b)
    w1_ref, b1_ref,        # hidden layer 0
    w2_ref, b2_ref,        # hidden layer 1
    wa_ref, ba_ref,        # action head
    act_ref,               # out: [TB, 128] int32   (lane-broadcast action id)
    logp_ref,              # out: [TB, 128] float32 (lane-broadcast log-prob)
):
    x = obs_ref[...]                                                   # bf16

    # FeatureNet: Linear + ReLU (bf16 MXU, f32 accumulate)
    h = jnp.dot(x, wf_ref[...], preferred_element_type=jnp.float32) + bf_ref[...]
    x = jnp.maximum(h, 0.0).astype(jnp.bfloat16)

    # hidden_layer = mlp(feature_dim, hidden_dims, last_relu=True): (Linear+ReLU) x 2
    h = jnp.dot(x, w1_ref[...], preferred_element_type=jnp.float32) + b1_ref[...]
    x = jnp.maximum(h, 0.0).astype(jnp.bfloat16)
    h = jnp.dot(x, w2_ref[...], preferred_element_type=jnp.float32) + b2_ref[...]
    x = jnp.maximum(h, 0.0).astype(jnp.bfloat16)

    # ACTLayer action head: f32 logits
    logits = jnp.dot(x, wa_ref[...], preferred_element_type=jnp.float32) + ba_ref[...]

    # deterministic action = first argmax(logits); compare in f32.
    max_logit = jnp.max(logits, axis=-1, keepdims=True)                # [TB, 1]
    a_dim = logits.shape[-1]
    ids = jax.lax.broadcasted_iota(jnp.int32, logits.shape, 1)         # [TB, A]
    cand = jnp.where(logits == max_logit, ids, a_dim)
    action = jnp.min(cand, axis=-1, keepdims=True)                     # [TB, 1] int32

    # log_softmax at the argmax = -log(sum(exp(logits - max)))
    sum_exp = jnp.sum(jnp.exp(logits - max_logit), axis=-1, keepdims=True)
    logp = -jnp.log(sum_exp)                                           # [TB, 1]

    # Lane-dense (unmasked) stores: broadcast across 128 lanes, wrapper slices col 0.
    act_ref[...] = jnp.broadcast_to(action.astype(jnp.int32), act_ref.shape)
    logp_ref[...] = jnp.broadcast_to(logp.astype(jnp.float32), logp_ref.shape)


# ------------------------------- wrapper ------------------------------------
def ppo_actor_forward(obs, params, *, block_batch=256):
    """Returns (actions [B,1] int32, action_log_probs [B,1] f32)."""
    wf, bf, w1, b1, w2, b2, wa, ba = params
    B, obs_dim = obs.shape
    F, H1, H2, A = wf.shape[1], w1.shape[1], w2.shape[1], wa.shape[1]

    # Batch tile: multiple of 8 sublanes, capped at block_batch rows per grid step.
    TB = min(block_batch, _round_up(B, 8))
    B_pad = _round_up(B, TB)
    n_tiles = B_pad // TB

    obs_bf = obs.astype(jnp.bfloat16)
    if B_pad != B:
        # Padded rows compute garbage and are sliced off below (no masking needed).
        obs_bf = jnp.pad(obs_bf, ((0, B_pad - B), (0, 0)))

    wf_b, w1_b, w2_b, wa_b = (w.astype(jnp.bfloat16) for w in (wf, w1, w2, wa))
    args = (obs_bf, wf_b, bf, w1_b, b1, w2_b, b2, wa_b, ba)

    def pinned(shape):
        # Weights / biases: same block for every batch tile -> VMEM resident.
        return pl.BlockSpec(shape, lambda i: (0, 0))

    in_specs = [
        pl.BlockSpec((TB, obs_dim), lambda i: (i, 0)),   # obs tiled by batch
        pinned((obs_dim, F)), pinned((1, F)),
        pinned((F, H1)),      pinned((1, H1)),
        pinned((H1, H2)),     pinned((1, H2)),
        pinned((H2, A)),      pinned((1, A)),
    ]
    out_specs = (
        pl.BlockSpec((TB, _LANES), lambda i: (i, 0)),
        pl.BlockSpec((TB, _LANES), lambda i: (i, 0)),
    )

    flops = 2 * B_pad * (obs_dim * F + F * H1 + H1 * H2 + H2 * A)
    bytes_accessed = (
        obs_bf.size * 2
        + n_tiles * sum(int(w.size) * 2 for w in (wf_b, w1_b, w2_b, wa_b))
        + n_tiles * sum(int(b.size) * 4 for b in (bf, b1, b2, ba))
        + 2 * B_pad * _LANES * 4
    )

    act_slab, logp_slab = pl.pallas_call(
        ppo_actor_kernel,
        out_shape=(
            jax.ShapeDtypeStruct((B_pad, _LANES), jnp.int32),
            jax.ShapeDtypeStruct((B_pad, _LANES), jnp.float32),
        ),
        grid=(n_tiles,),
        in_specs=in_specs,
        out_specs=out_specs,
        compiler_params=pltpu.CompilerParams(
            dimension_semantics=("parallel",),
        ),
        cost_estimate=pl.CostEstimate(
            flops=flops,
            transcendentals=B_pad * (A + 1),
            bytes_accessed=bytes_accessed,
        ),
    )(*args)

    actions = act_slab[:B, :1]
    log_probs = logp_slab[:B, :1]
    return actions, log_probs


# ------------------------------- params -------------------------------------
def init_params(key, obs_dim, feature_dim, hidden_dims, action_dim):
    """Deterministic synthetic init (scaled normal). Biases stored as [1, out]."""
    dims = [(obs_dim, feature_dim),
            (feature_dim, hidden_dims[0]),
            (hidden_dims[0], hidden_dims[1]),
            (hidden_dims[1], action_dim)]
    params = []
    for i, (din, dout) in enumerate(dims):
        key, kw = jax.random.split(key)
        scale = 0.01 if i == len(dims) - 1 else (1.0 / jnp.sqrt(din))  # _gain=0.01 head
        w = (scale * jax.random.normal(kw, (din, dout))).astype(jnp.float32)
        b = jnp.zeros((1, dout), jnp.float32)
        params.extend([w, b])
    return tuple(params)


# ------------------------------- reference ----------------------------------
def ppo_actor_ref(obs, params):
    """Pure-JAX reference mirroring the kernel's bf16-matmul / f32-accumulate path."""
    wf, bf, w1, b1, w2, b2, wa, ba = params

    def lin(x, w, b):
        return jnp.dot(x.astype(jnp.bfloat16), w.astype(jnp.bfloat16),
                       preferred_element_type=jnp.float32) + b

    x = jnp.maximum(lin(obs, wf, bf), 0.0)
    x = jnp.maximum(lin(x, w1, b1), 0.0)
    x = jnp.maximum(lin(x, w2, b2), 0.0)
    logits = lin(x, wa, ba)
    action = jnp.argmax(logits, axis=-1, keepdims=True).astype(jnp.int32)
    logp = jnp.max(jax.nn.log_softmax(logits, axis=-1), axis=-1, keepdims=True)
    return action, logp


# --------------------------------- main -------------------------------------
if __name__ == "__main__":
    B, OBS_DIM = 8, 32
    FEATURE_DIM = 32
    HIDDEN_DIMS = [32, 32]
    ACTION_DIM = 8

    key = jax.random.PRNGKey(0)
    key, kobs = jax.random.split(key)
    obs = jax.random.normal(kobs, (B, OBS_DIM), dtype=jnp.float32)
    params = init_params(key, OBS_DIM, FEATURE_DIM, HIDDEN_DIMS, ACTION_DIM)

    actions, log_probs = ppo_actor_forward(obs, params)
    jax.block_until_ready((actions, log_probs))

    ref_actions, ref_logp = ppo_actor_ref(obs, params)
    assert actions.shape == (B, 1) and log_probs.shape == (B, 1)
    assert jnp.array_equal(actions, ref_actions)
    assert jnp.allclose(log_probs, ref_logp, atol=2e-3, rtol=2e-3)

    print("KERNEL_OK")
</pallas_src>

<mosaic_0001>
module attributes {stable_mosaic.version = 11 : i64} {
  func.func @ppo_actor_kernel(%arg0: i32, %arg1: memref<8x32xbf16, #tpu.memory_space<vmem>>, %arg2: memref<32x32xbf16, #tpu.memory_space<vmem>>, %arg3: memref<1x32xf32, #tpu.memory_space<vmem>>, %arg4: memref<32x32xbf16, #tpu.memory_space<vmem>>, %arg5: memref<1x32xf32, #tpu.memory_space<vmem>>, %arg6: memref<32x32xbf16, #tpu.memory_space<vmem>>, %arg7: memref<1x32xf32, #tpu.memory_space<vmem>>, %arg8: memref<32x8xbf16, #tpu.memory_space<vmem>>, %arg9: memref<1x8xf32, #tpu.memory_space<vmem>>, %arg10: memref<8x128xi32, #tpu.memory_space<vmem>>, %arg11: memref<8x128xf32, #tpu.memory_space<vmem>>) attributes {dimension_semantics = [#tpu.dimension_semantics<parallel>], iteration_bounds = array<i64: 1>, scalar_prefetch = 0 : i64, scratch_operands = 0 : i64, tpu.core_type = #tpu.core_type<tc>, window_params = [{transform_indices = @transform_0, window_bounds = array<i64: 8, 32>}, {pipeline_mode = #tpu.pipeline_mode<synchronous>, transform_indices = @transform_1, window_bounds = array<i64: 32, 32>}, {pipeline_mode = #tpu.pipeline_mode<synchronous>, transform_indices = @transform_2, window_bounds = array<i64: 1, 32>}, {pipeline_mode = #tpu.pipeline_mode<synchronous>, transform_indices = @transform_3, window_bounds = array<i64: 32, 32>}, {pipeline_mode = #tpu.pipeline_mode<synchronous>, transform_indices = @transform_4, window_bounds = array<i64: 1, 32>}, {pipeline_mode = #tpu.pipeline_mode<synchronous>, transform_indices = @transform_5, window_bounds = array<i64: 32, 32>}, {pipeline_mode = #tpu.pipeline_mode<synchronous>, transform_indices = @transform_6, window_bounds = array<i64: 1, 32>}, {pipeline_mode = #tpu.pipeline_mode<synchronous>, transform_indices = @transform_7, window_bounds = array<i64: 32, 8>}, {pipeline_mode = #tpu.pipeline_mode<synchronous>, transform_indices = @transform_8, window_bounds = array<i64: 1, 8>}, {transform_indices = @transform_9, window_bounds = array<i64: 8, 128>}, {transform_indices = @transform_10, window_bounds = array<i64: 8, 128>}]} {
    %c0 = arith.constant 0 : index
    %c0_0 = arith.constant 0 : index
    %0 = vector.load %arg1[%c0, %c0_0] : memref<8x32xbf16, #tpu.memory_space<vmem>>, vector<8x32xbf16>
    %c0_1 = arith.constant 0 : index
    %c0_2 = arith.constant 0 : index
    %1 = vector.load %arg2[%c0_1, %c0_2] : memref<32x32xbf16, #tpu.memory_space<vmem>>, vector<32x32xbf16>
    %cst = arith.constant dense<0.000000e+00> : vector<8x32xf32>
    %2 = tpu.matmul %0, %1, %cst {dimension_numbers = #tpu.dot_dimension_numbers<[1], [0], [0], [1], [0, 0, 1, 1], [], []>} : vector<8x32xbf16>, vector<32x32xbf16>, vector<8x32xf32> -> vector<8x32xf32>
    %c0_3 = arith.constant 0 : index
    %c0_4 = arith.constant 0 : index
    %3 = vector.load %arg3[%c0_3, %c0_4] : memref<1x32xf32, #tpu.memory_space<vmem>>, vector<1x32xf32>
    %4 = vector.broadcast %3 : vector<1x32xf32> to vector<8x32xf32>
    %5 = arith.addf %2, %4 : vector<8x32xf32>
    %cst_5 = arith.constant 0.000000e+00 : f32
    %6 = vector.broadcast %cst_5 : f32 to vector<8x32xf32>
    %7 = arith.maximumf %5, %6 : vector<8x32xf32>
    %8 = arith.truncf %7 : vector<8x32xf32> to vector<8x32xbf16>
    %c0_6 = arith.constant 0 : index
    %c0_7 = arith.constant 0 : index
    %9 = vector.load %arg4[%c0_6, %c0_7] : memref<32x32xbf16, #tpu.memory_space<vmem>>, vector<32x32xbf16>
    %cst_8 = arith.constant dense<0.000000e+00> : vector<8x32xf32>
    %10 = tpu.matmul %8, %9, %cst_8 {dimension_numbers = #tpu.dot_dimension_numbers<[1], [0], [0], [1], [0, 0, 1, 1], [], []>} : vector<8x32xbf16>, vector<32x32xbf16>, vector<8x32xf32> -> vector<8x32xf32>
    %c0_9 = arith.constant 0 : index
    %c0_10 = arith.constant 0 : index
    %11 = vector.load %arg5[%c0_9, %c0_10] : memref<1x32xf32, #tpu.memory_space<vmem>>, vector<1x32xf32>
    %12 = vector.broadcast %11 : vector<1x32xf32> to vector<8x32xf32>
    %13 = arith.addf %10, %12 : vector<8x32xf32>
    %cst_11 = arith.constant 0.000000e+00 : f32
    %14 = vector.broadcast %cst_11 : f32 to vector<8x32xf32>
    %15 = arith.maximumf %13, %14 : vector<8x32xf32>
    %16 = arith.truncf %15 : vector<8x32xf32> to vector<8x32xbf16>
    %c0_12 = arith.constant 0 : index
    %c0_13 = arith.constant 0 : index
    %17 = vector.load %arg6[%c0_12, %c0_13] : memref<32x32xbf16, #tpu.memory_space<vmem>>, vector<32x32xbf16>
    %cst_14 = arith.constant dense<0.000000e+00> : vector<8x32xf32>
    %18 = tpu.matmul %16, %17, %cst_14 {dimension_numbers = #tpu.dot_dimension_numbers<[1], [0], [0], [1], [0, 0, 1, 1], [], []>} : vector<8x32xbf16>, vector<32x32xbf16>, vector<8x32xf32> -> vector<8x32xf32>
    %c0_15 = arith.constant 0 : index
    %c0_16 = arith.constant 0 : index
    %19 = vector.load %arg7[%c0_15, %c0_16] : memref<1x32xf32, #tpu.memory_space<vmem>>, vector<1x32xf32>
    %20 = vector.broadcast %19 : vector<1x32xf32> to vector<8x32xf32>
    %21 = arith.addf %18, %20 : vector<8x32xf32>
    %cst_17 = arith.constant 0.000000e+00 : f32
    %22 = vector.broadcast %cst_17 : f32 to vector<8x32xf32>
    %23 = arith.maximumf %21, %22 : vector<8x32xf32>
    %24 = arith.truncf %23 : vector<8x32xf32> to vector<8x32xbf16>
    %c0_18 = arith.constant 0 : index
    %c0_19 = arith.constant 0 : index
    %25 = vector.load %arg8[%c0_18, %c0_19] : memref<32x8xbf16, #tpu.memory_space<vmem>>, vector<32x8xbf16>
    %cst_20 = arith.constant dense<0.000000e+00> : vector<8x8xf32>
    %26 = tpu.matmul %24, %25, %cst_20 {dimension_numbers = #tpu.dot_dimension_numbers<[1], [0], [0], [1], [0, 0, 1, 1], [], []>} : vector<8x32xbf16>, vector<32x8xbf16>, vector<8x8xf32> -> vector<8x8xf32>
    %c0_21 = arith.constant 0 : index
    %c0_22 = arith.constant 0 : index
    %27 = vector.load %arg9[%c0_21, %c0_22] : memref<1x8xf32, #tpu.memory_space<vmem>>, vector<1x8xf32>
    %28 = vector.broadcast %27 : vector<1x8xf32> to vector<8x8xf32>
    %29 = arith.addf %26, %28 : vector<8x8xf32>
    %cst_23 = arith.constant dense<0xFF800000> : vector<8xf32>
    %30 = vector.multi_reduction <maximumf>, %29, %cst_23 [1] : vector<8x8xf32> to vector<8xf32>
    %31 = vector.shape_cast %30 : vector<8xf32> to vector<8x1xf32>
    %32 = tpu.iota {dimensions = array<i32: 1>} : vector<8x8xi32>
    %33 = vector.broadcast %31 : vector<8x1xf32> to vector<8x8xf32>
    %34 = arith.cmpf oeq, %29, %33 : vector<8x8xf32>
    %c8_i32 = arith.constant 8 : i32
    %35 = vector.broadcast %c8_i32 : i32 to vector<8x8xi32>
    %36 = arith.select %34, %32, %35 : vector<8x8xi1>, vector<8x8xi32>
    %cst_24 = arith.constant dense<2147483647> : vector<8xi32>
    %37 = vector.multi_reduction <minsi>, %36, %cst_24 [1] : vector<8x8xi32> to vector<8xi32>
    %38 = vector.shape_cast %37 : vector<8xi32> to vector<8x1xi32>
    %39 = vector.broadcast %31 : vector<8x1xf32> to vector<8x8xf32>
    %40 = arith.subf %29, %39 : vector<8x8xf32>
    %41 = math.exp %40 : vector<8x8xf32>
    %cst_25 = arith.constant dense<0.000000e+00> : vector<8xf32>
    %42 = vector.multi_reduction <add>, %41, %cst_25 [1] : vector<8x8xf32> to vector<8xf32>
    %43 = vector.shape_cast %42 : vector<8xf32> to vector<8x1xf32>
    %44 = math.log %43 : vector<8x1xf32>
    %cst_26 = arith.constant 0.000000e+00 : f32
    %45 = vector.broadcast %cst_26 : f32 to vector<8x1xf32>
    %46 = arith.subf %45, %44 : vector<8x1xf32>
    %47 = vector.shape_cast %38 : vector<8x1xi32> to vector<8x1xi32>
    %48 = vector.broadcast %47 : vector<8x1xi32> to vector<8x128xi32>
    %c0_27 = arith.constant 0 : index
    %c0_28 = arith.constant 0 : index
    %49 = vector.load %arg10[%c0_27, %c0_28] : memref<8x128xi32, #tpu.memory_space<vmem>>, vector<8x128xi32>
    tpu.vector_store %arg10[%c0_27, %c0_28], %48 {strides = array<i32>} : memref<8x128xi32, #tpu.memory_space<vmem>>, vector<8x128xi32>,
    %50 = vector.shape_cast %46 : vector<8x1xf32> to vector<8x1xf32>
    %51 = vector.broadcast %50 : vector<8x1xf32> to vector<8x128xf32>
    %c0_29 = arith.constant 0 : index
    %c0_30 = arith.constant 0 : index
    %52 = vector.load %arg11[%c0_29, %c0_30] : memref<8x128xf32, #tpu.memory_space<vmem>>, vector<8x128xf32>
    tpu.vector_store %arg11[%c0_29, %c0_30], %51 {strides = array<i32>} : memref<8x128xf32, #tpu.memory_space<vmem>>, vector<8x128xf32>,
    return
  }
  func.func @transform_0(%arg0: i32) -> (i32, i32) {
    %c0_i32 = arith.constant 0 : i32
    %c0_i32_0 = arith.constant 0 : i32
    return %arg0, %c0_i32 : i32, i32
  }
  func.func @transform_1(%arg0: i32) -> (i32, i32) {
    %c0_i32 = arith.constant 0 : i32
    %c0_i32_0 = arith.constant 0 : i32
    %c0_i32_1 = arith.constant 0 : i32
    return %c0_i32, %c0_i32_0 : i32, i32
  }
  func.func @transform_2(%arg0: i32) -> (i32, i32) {
    %c0_i32 = arith.constant 0 : i32
    %c0_i32_0 = arith.constant 0 : i32
    %c0_i32_1 = arith.constant 0 : i32
    return %c0_i32, %c0_i32_0 : i32, i32
  }
  func.func @transform_3(%arg0: i32) -> (i32, i32) {
    %c0_i32 = arith.constant 0 : i32
    %c0_i32_0 = arith.constant 0 : i32
    %c0_i32_1 = arith.constant 0 : i32
    return %c0_i32, %c0_i32_0 : i32, i32
  }
  func.func @transform_4(%arg0: i32) -> (i32, i32) {
    %c0_i32 = arith.constant 0 : i32
    %c0_i32_0 = arith.constant 0 : i32
    %c0_i32_1 = arith.constant 0 : i32
    return %c0_i32, %c0_i32_0 : i32, i32
  }
  func.func @transform_5(%arg0: i32) -> (i32, i32) {
    %c0_i32 = arith.constant 0 : i32
    %c0_i32_0 = arith.constant 0 : i32
    %c0_i32_1 = arith.constant 0 : i32
    return %c0_i32, %c0_i32_0 : i32, i32
  }
  func.func @transform_6(%arg0: i32) -> (i32, i32) {
    %c0_i32 = arith.constant 0 : i32
    %c0_i32_0 = arith.constant 0 : i32
    %c0_i32_1 = arith.constant 0 : i32
    return %c0_i32, %c0_i32_0 : i32, i32
  }
  func.func @transform_7(%arg0: i32) -> (i32, i32) {
    %c0_i32 = arith.constant 0 : i32
    %c0_i32_0 = arith.constant 0 : i32
    %c0_i32_1 = arith.constant 0 : i32
    return %c0_i32, %c0_i32_0 : i32, i32
  }
  func.func @transform_8(%arg0: i32) -> (i32, i32) {
    %c0_i32 = arith.constant 0 : i32
    %c0_i32_0 = arith.constant 0 : i32
    %c0_i32_1 = arith.constant 0 : i32
    return %c0_i32, %c0_i32_0 : i32, i32
  }
  func.func @transform_9(%arg0: i32) -> (i32, i32) {
    %c0_i32 = arith.constant 0 : i32
    %c0_i32_0 = arith.constant 0 : i32
    return %arg0, %c0_i32 : i32, i32
  }
  func.func @transform_10(%arg0: i32) -> (i32, i32) {
    %c0_i32 = arith.constant 0 : i32
    %c0_i32_0 = arith.constant 0 : i32
    return %arg0, %c0_i32 : i32, i32
  }
}

</mosaic_0001>

<llo_original>
// kernel: tpu_custom_call.1
$region0: #{tpu_custom_call.1}
  #allocation0 [shape = 'u32[]', space=smem, size = 0x4, offset = 0x4, fixed_abs, tag = 'smem constant byte address 0x4 - core index']
  #allocation1 [shape = 'u32[72,128]{1,0:T(1,128)}', space=vmem, size = 0x9000, scoped, tag = 'internal scratch']
  %s0 = inlined_call_operand.vmem [shape: bf16[8,32], index: 0, kind: input, shape index: {}]
  %s1 = inlined_call_operand.vmem [shape: bf16[32,32], index: 1, kind: input, shape index: {}]
  %s2 = inlined_call_operand.vmem [shape: f32[1,32], index: 2, kind: input, shape index: {}]
  %s3 = inlined_call_operand.hbm [shape: bf16[32,32], index: 3, kind: input, shape index: {}]
  %s4 = inlined_call_operand.vmem [shape: f32[1,32], index: 4, kind: input, shape index: {}]
  %s5 = inlined_call_operand.hbm [shape: bf16[32,32], index: 5, kind: input, shape index: {}]
  %s6 = inlined_call_operand.hbm [shape: f32[1,32], index: 6, kind: input, shape index: {}]
  %s7 = inlined_call_operand.vmem [shape: bf16[32,8], index: 7, kind: input, shape index: {}]
  %s8 = inlined_call_operand.vmem [shape: f32[1,8], index: 8, kind: input, shape index: {}]
  %s9 = inlined_call_operand.hbm [shape: s32[8,128], index: 9, kind: output, shape index: {0}]
  %s10 = inlined_call_operand.hbm [shape: f32[8,128], index: 10, kind: output, shape index: {1}]
  %11 = xla_tuple %s9, %s10
  %s12 = sld [smem:[#allocation0]]
  $region66: #{tpu_custom_call.1} parent=0
    _
  %s14 = ssub.s32 1, %s12
  %s15 = scalar_select 0, %s14, %s12
  $region1: #{tpu_custom_call.1} parent=0
    #allocation2 [shape = 'u8[8192]{0}', space=vmem, size = 0x2000, scoped, tag = 'input window, operand 3, single buffered']
    #allocation3 [shape = 's32[1]{0}', space=sflag, size = 0x4, scoped, tag = 'scoped memory for tpu_custom_call.1']
    #allocation4 [shape = 's32[1]{0}', space=sflag, size = 0x4, scoped, tag = 'scoped memory for tpu_custom_call.1']
    #allocation5 [shape = 'u8[8192]{0}', space=vmem, size = 0x2000, scoped, tag = 'input window, operand 5, single buffered']
    #allocation6 [shape = 's32[1]{0}', space=sflag, size = 0x4, scoped, tag = 'scoped memory for tpu_custom_call.1']
    #allocation7 [shape = 'u8[512]{0}', space=vmem, size = 0x400, scoped, tag = 'input window, operand 6, single buffered']
    #allocation8 [shape = 'u8[4096]{0}', space=vmem, size = 0x1000, scoped, tag = 'output window, operand 0, single buffered']
    #allocation9 [shape = 'u8[4096]{0}', space=vmem, size = 0x1000, scoped, tag = 'output window, operand 1, single buffered']
    #allocation10 [shape = 's32[1]{0}', space=sflag, size = 0x4, scoped, tag = 'scoped memory for tpu_custom_call.1']
    %16 = vsyncpa [#allocation3], 0
    %17 = vsyncpa [#allocation6], 0
    %18 = vsyncpa [#allocation4], 0
    %19 = vsyncpa [#allocation10], 0
    // Predicated region
    $region2: #{tpu_custom_call.1} parent=1 // pred_check
      _
    $region3: #{tpu_custom_call.1} parent=1 // pred_check_branch
      %21 = sbr.rel (0) target = $region5
    $region4: #{tpu_custom_call.1} parent=1 // pred_region
      _
    $region5: #{tpu_custom_call.1} parent=1 // pred_fallthru
      _
    // Predicated region
    $region6: #{tpu_custom_call.1} parent=1 // pred_check
      _
    $region7: #{tpu_custom_call.1} parent=1 // pred_check_branch
      %23 = sbr.rel (0) target = $region9
    $region8: #{tpu_custom_call.1} parent=1 // pred_region
      _
    $region9: #{tpu_custom_call.1} parent=1 // pred_fallthru
      _
    // Predicated region
    $region10: #{tpu_custom_call.1} parent=1 // pred_check
      _
    $region11: #{tpu_custom_call.1} parent=1 // pred_check_branch
      %25 = sbr.rel (0) target = $region13
    $region12: #{tpu_custom_call.1} parent=1 // pred_region
      _
    $region13: #{tpu_custom_call.1} parent=1 // pred_fallthru
      _
    // Predicated region
    $region14: #{tpu_custom_call.1} parent=1 // pred_check
      _
    $region15: #{tpu_custom_call.1} parent=1 // pred_check_branch
      %27 = sbr.rel (0) target = $region17
    $region16: #{tpu_custom_call.1} parent=1 // pred_region
      %29 = vsyncadd [#allocation3], 0
      %s30 = sshll.u32 %s3, 4
      %s31 = int_to_ptr.hbm [resolvable:$true] %s30
      %s32 = sshll.u32 [#allocation2], 4
      %s33 = int_to_ptr.vmem [resolvable:$true] %s32
      %38 = dma.hbm_to_vmem [thread:$0]  %s31, 256, %s33, [#allocation3], 64, 64, 4
    $region17: #{tpu_custom_call.1} parent=1 // pred_fallthru
      _
    // Predicated region
    $region18: #{tpu_custom_call.1} parent=1 // pred_check
      _
    $region19: #{tpu_custom_call.1} parent=1 // pred_check_branch
      %40 = sbr.rel (0) target = $region21
    $region20: #{tpu_custom_call.1} parent=1 // pred_region
      _
    $region21: #{tpu_custom_call.1} parent=1 // pred_fallthru
      _
    // Predicated region
    $region22: #{tpu_custom_call.1} parent=1 // pred_check
      _
    $region23: #{tpu_custom_call.1} parent=1 // pred_check_branch
      %42 = sbr.rel (0) target = $region25
    $region24: #{tpu_custom_call.1} parent=1 // pred_region
      %44 = vsyncadd [#allocation6], 0
      %s45 = sshll.u32 %s5, 4
      %s46 = int_to_ptr.hbm [resolvable:$true] %s45
      %s47 = sshll.u32 [#allocation5], 4
      %s48 = int_to_ptr.vmem [resolvable:$true] %s47
      %53 = dma.hbm_to_vmem [thread:$0]  %s46, 256, %s48, [#allocation6], 64, 64, 4
    $region25: #{tpu_custom_call.1} parent=1 // pred_fallthru
      _
    // Predicated region
    $region26: #{tpu_custom_call.1} parent=1 // pred_check
      _
    $region27: #{tpu_custom_call.1} parent=1 // pred_check_branch
      %55 = sbr.rel (0) target = $region29
    $region28: #{tpu_custom_call.1} parent=1 // pred_region
      %57 = vsyncadd [#allocation6], 0
      %s59 = sshll.u32 %s6, 4
      %s60 = int_to_ptr.hbm [resolvable:$true] %s59
      %s61 = sshll.u32 [#allocation7], 4
      %s62 = int_to_ptr.vmem [resolvable:$true] %s61
      %64 = dma.hbm_to_vmem [thread:$0]  %s60, 16, %s62, [#allocation6]
    $region29: #{tpu_custom_call.1} parent=1 // pred_fallthru
      _
    // Predicated region
    $region30: #{tpu_custom_call.1} parent=1 // pred_check
      _
    $region31: #{tpu_custom_call.1} parent=1 // pred_check_branch
      %66 = sbr.rel (0) target = $region33
    $region32: #{tpu_custom_call.1} parent=1 // pred_region
      _
    $region33: #{tpu_custom_call.1} parent=1 // pred_fallthru
      _
    // Predicated region
    $region34: #{tpu_custom_call.1} parent=1 // pred_check
      _
    $region35: #{tpu_custom_call.1} parent=1 // pred_check_branch
      %68 = sbr.rel (0) target = $region37
    $region36: #{tpu_custom_call.1} parent=1 // pred_region
      _
    $region37: #{tpu_custom_call.1} parent=1 // pred_fallthru
      _
    // Predicated region
    $region38: #{tpu_custom_call.1} parent=1 // pred_check
      _
    $region39: #{tpu_custom_call.1} parent=1 // pred_check_branch
      %70 = sbr.rel (0) target = $region41
    $region40: #{tpu_custom_call.1} parent=1 // pred_region
      %72 = dma.done [#allocation3], 256
    $region41: #{tpu_custom_call.1} parent=1 // pred_fallthru
      _
    // Predicated region
    $region42: #{tpu_custom_call.1} parent=1 // pred_check
      _
    $region43: #{tpu_custom_call.1} parent=1 // pred_check_branch
      %74 = sbr.rel (0) target = $region45
    $region44: #{tpu_custom_call.1} parent=1 // pred_region
      %76 = dma.done [#allocation6], 256
    $region45: #{tpu_custom_call.1} parent=1 // pred_fallthru
      _
    // Predicated region
    $region46: #{tpu_custom_call.1} parent=1 // pred_check
      _
    $region47: #{tpu_custom_call.1} parent=1 // pred_check_branch
      %78 = sbr.rel (0) target = $region49
    $region48: #{tpu_custom_call.1} parent=1 // pred_region
      %80 = dma.done [#allocation6], 16
    $region49: #{tpu_custom_call.1} parent=1 // pred_fallthru
      _
    %v82 = vld [vmem:[%s0] sm:$0xf]
    %v83 = vld [vmem:[%s1] sm:$0xf]
    %v84 = vld [vmem:[%s1 + $0x4] sm:$0xf]
    %v85 = vld [vmem:[%s1 + $0x8] sm:$0xf]
    %v86 = vld [vmem:[%s1 + $0xc] sm:$0xf]
    %v87 = vld [vmem:[%s2] sm:$0x1]
    %v89 = vperm.slane %v87, 0
    %v95 = vunpack.c.l.b16 %v83
    %v96 = vunpack.c.l.b16 %v84
    %v97 = vunpack.c.l.b16 %v85
    %v98 = vunpack.c.l.b16 %v86
    %v99 = vpack.c.b16 %v96, %v95
    %v100 = vpack.c.b16 %v98, %v97
    %vm103 = vcmask 261120
    %v105 = vsel %vm103, %v82, 0
    %107 = vmatpush.bf16.msra.mxu0 0
    %108 = vmatpush.bf16.msra.mxu0 0
    %109 = vmatpush.bf16.msra.mxu0 0
    %110 = vmatpush.bf16.msra.mxu0 0
    %111 = vmatpush.bf16.msra.mxu0 0
    %112 = vmatpush.bf16.msra.mxu0 0
    %113 = vmatpush.bf16.msra.mxu0 %v100
    %114 = vmatpush.bf16.msra.mxu0 %v99
    %115 = vmatmul.bf16.gmra.mxu0 %v105
    %v116 = vpop.f32.mrf.mxu0
    %v117 = vadd.f32 %v89, %v116
    %v118 = vpop.f32.mrf.mxu0
    %119 = vdwg.mxu0
    %v120 = vmax.f32 %v117, 0.0
    %v121 = vpack.c.bf16 %v120, %v120
    %v122 = vld [vmem:[#allocation2] sm:$0xf]
    %v123 = vld [vmem:[#allocation2 + $0x4] sm:$0xf]
    %v124 = vld [vmem:[#allocation2 + $0x8] sm:$0xf]
    %v125 = vld [vmem:[#allocation2 + $0xc] sm:$0xf]
    %v126 = vld [vmem:[%s4] sm:$0x1]
    %v128 = vperm.slane %v126, 0
    %v134 = vunpack.c.l.b16 %v122
    %v135 = vunpack.c.l.b16 %v123
    %v136 = vunpack.c.l.b16 %v124
    %v137 = vunpack.c.l.b16 %v125
    %v138 = vpack.c.b16 %v135, %v134
    %v139 = vpack.c.b16 %v137, %v136
    %v143 = vsel %vm103, %v121, 0
    %145 = vmatpush.bf16.msra.mxu0 0
    %146 = vmatpush.bf16.msra.mxu0 0
    %147 = vmatpush.bf16.msra.mxu0 0
    %148 = vmatpush.bf16.msra.mxu0 0
    %149 = vmatpush.bf16.msra.mxu0 0
    %150 = vmatpush.bf16.msra.mxu0 0
    %151 = vmatpush.bf16.msra.mxu0 %v139
    %152 = vmatpush.bf16.msra.mxu0 %v138
    %153 = vmatmul.bf16.gmra.mxu0 %v143
    %v154 = vpop.f32.mrf.mxu0
    %v155 = vadd.f32 %v128, %v154
    %v156 = vpop.f32.mrf.mxu0
    %157 = vdwg.mxu0
    %v158 = vmax.f32 %v155, 0.0
    %v159 = vpack.c.bf16 %v158, %v158
    %v160 = vld [vmem:[#allocation5] sm:$0xf]
    %v161 = vld [vmem:[#allocation5 + $0x4] sm:$0xf]
    %v162 = vld [vmem:[#allocation5 + $0x8] sm:$0xf]
    %v163 = vld [vmem:[#allocation5 + $0xc] sm:$0xf]
    %v164 = vld [vmem:[#allocation7] sm:$0x1]
    %v166 = vperm.slane %v164, 0
    %v172 = vunpack.c.l.b16 %v160
    %v173 = vunpack.c.l.b16 %v161
    %v174 = vunpack.c.l.b16 %v162
    %v175 = vunpack.c.l.b16 %v163
    %v176 = vpack.c.b16 %v173, %v172
    %v177 = vpack.c.b16 %v175, %v174
    %v181 = vsel %vm103, %v159, 0
    %183 = vmatpush.bf16.msra.mxu0 0
    %184 = vmatpush.bf16.msra.mxu0 0
    %185 = vmatpush.bf16.msra.mxu0 0
    %186 = vmatpush.bf16.msra.mxu0 0
    %187 = vmatpush.bf16.msra.mxu0 0
    %188 = vmatpush.bf16.msra.mxu0 0
    %189 = vmatpush.bf16.msra.mxu0 %v177
    %190 = vmatpush.bf16.msra.mxu0 %v176
    %191 = vmatmul.bf16.gmra.mxu0 %v181
    %v192 = vpop.f32.mrf.mxu0
    %v193 = vadd.f32 %v166, %v192
    %v194 = vpop.f32.mrf.mxu0
    %195 = vdwg.mxu0
    %v196 = vmax.f32 %v193, 0.0
    %v197 = vpack.c.bf16 %v196, %v196
    %v198 = vld [vmem:[%s7] sm:$0xf]
    %v199 = vld [vmem:[%s7 + $0x4] sm:$0xf]
    %v200 = vld [vmem:[%s7 + $0x8] sm:$0xf]
    %v201 = vld [vmem:[%s7 + $0xc] sm:$0xf]
    %v202 = vld [vmem:[%s8] sm:$0x1]
    %v204 = vperm.slane %v202, 0
    %v210 = vunpack.c.l.b16 %v198
    %v211 = vunpack.c.l.b16 %v199
    %v212 = vunpack.c.l.b16 %v200
    %v213 = vunpack.c.l.b16 %v201
    %v214 = vpack.c.b16 %v211, %v210
    %v215 = vpack.c.b16 %v213, %v212
    %v219 = vsel %vm103, %v197, 0
    %221 = vmatpush.bf16.msra.mxu0 0
    %222 = vmatpush.bf16.msra.mxu0 0
    %223 = vmatpush.bf16.msra.mxu0 0
    %224 = vmatpush.bf16.msra.mxu0 0
    %225 = vmatpush.bf16.msra.mxu0 0
    %226 = vmatpush.bf16.msra.mxu0 0
    %227 = vmatpush.bf16.msra.mxu0 %v215
    %228 = vmatpush.bf16.msra.mxu0 %v214
    %229 = vmatmul.bf16.gmra.mxu0 %v219
    %v230 = vpop.f32.mrf.mxu0
    %v231 = vadd.f32 %v204, %v230
    %v232 = vpop.f32.mrf.mxu0
    %233 = vdwg.mxu0
    %vm234 = vcmask 64512
    %v235 = vsel %vm234, %v231, -inf
    %236 = vmax.xlane.f32.xlu0 %v235
    %v237 = vpop.xlane.xlu0 %236
    %v238 = vlaneseq
    %v239 = vand.u32 %v238, 127
    %vm240 = vcmp.eq.f32.partialorder %v231, %v237
    %v241 = vsel %vm240, %v239, 8
    %v242 = vsel %vm234, %v241, 2147483647
    %v243 = vand.u32 %v242, 65535
    %v244 = vshra.s32 %v242, 16
    %v245 = vcvt.s32.f32 %v243
    %v246 = vcvt.s32.f32 %v244
    %247 = vmin.xlane.f32.xlu0 %v246
    %v248 = vpop.xlane.xlu0 %247
    %vm249 = vcmp.eq.f32.partialorder %v246, %v248
    %v250 = vsel %vm249, %v245, inf
    %251 = vmin.xlane.f32.xlu0 %v250
    %v252 = vpop.xlane.xlu0 %251
    %v253 = vcvt.f32.s32 %v252
    %v254 = vcvt.f32.s32 %v248
    %v255 = vshll.u32 %v254, 16
    %v256 = vadd.s32 %v255, %v253
    %v257 = vsub.f32 %v231, %v237
    %v258 = vmul.f32 %v257, 1.442695
    %v259 = vpow.pop %v258
    %v260 = vsel %vm234, %v259, 0.0
    %261 = vadd.xlane.f32.xlu0 %v260
    %v262 = vpop.xlane.xlu0 %261
    %v263 = vlog2.pop %v262
    %v264 = vmul.f32 %v263, 0.6931472
    %v265 = vsub.f32 0.0, %v264
    %266 = vst [vmem:[#allocation8] sm:$0xff] %v256
    %267 = vst [vmem:[#allocation9] sm:$0xff] %v265
    // Predicated region
    $region50: #{tpu_custom_call.1} parent=1 // pred_check
      _
    $region51: #{tpu_custom_call.1} parent=1 // pred_check_branch
      %269 = sbr.rel (0) target = $region53
    $region52: #{tpu_custom_call.1} parent=1 // pred_region
      %271 = vsyncadd [#allocation4], 0
      %s273 = sshll.u32 [#allocation8], 4
      %s274 = int_to_ptr.vmem [resolvable:$true] %s273
      %s275 = sshll.u32 %s9, 4
      %s276 = int_to_ptr.hbm [resolvable:$true] %s275
      %278 = dma.vmem_to_hbm [thread:$0]  %s274, 128, %s276, [#allocation4]
    $region53: #{tpu_custom_call.1} parent=1 // pred_fallthru
      _
    // Predicated region
    $region54: #{tpu_custom_call.1} parent=1 // pred_check
      _
    $region55: #{tpu_custom_call.1} parent=1 // pred_check_branch
      %280 = sbr.rel (0) target = $region57
    $region56: #{tpu_custom_call.1} parent=1 // pred_region
      %282 = vsyncadd [#allocation10], 0
      %s284 = sshll.u32 [#allocation9], 4
      %s285 = int_to_ptr.vmem [resolvable:$true] %s284
      %s286 = sshll.u32 %s10, 4
      %s287 = int_to_ptr.hbm [resolvable:$true] %s286
      %289 = dma.vmem_to_hbm [thread:$0]  %s285, 128, %s287, [#allocation10]
    $region57: #{tpu_custom_call.1} parent=1 // pred_fallthru
      _
    // Predicated region
    $region58: #{tpu_custom_call.1} parent=1 // pred_check
      _
    $region59: #{tpu_custom_call.1} parent=1 // pred_check_branch
      %291 = sbr.rel (0) target = $region61
    $region60: #{tpu_custom_call.1} parent=1 // pred_region
      %293 = dma.done [#allocation4], 128
    $region61: #{tpu_custom_call.1} parent=1 // pred_fallthru
      _
    // Predicated region
    $region62: #{tpu_custom_call.1} parent=1 // pred_check
      _
    $region63: #{tpu_custom_call.1} parent=1 // pred_check_branch
      %295 = sbr.rel (0) target = $region65
    $region64: #{tpu_custom_call.1} parent=1 // pred_region
      %297 = dma.done [#allocation10], 128
    $region65: #{tpu_custom_call.1} parent=1 // pred_fallthru
      _
    %298 = vsyncpa [#allocation3], 1
    %299 = vsyncpa [#allocation6], 1
    %300 = vsyncpa [#allocation4], 1
    %301 = vsyncpa [#allocation10], 1

</llo_original>
